<compile_context>
chip_gen: v7x
topology: tpu7x:2x2x1
jax: 0.10.0
libtpu: 0.0.40
codegen_flags: <defaults>
</compile_context>

<pallas_src>
import functools
import math

import jax
import jax.numpy as jnp
import numpy as np
from jax import lax
from jax.experimental import pallas as pl
from jax.experimental.pallas import tpu as pltpu


# ----------------------------------------------------------------------------
# Kernel A: per-batch max of raw key feature logits (global key max pre-pass)
# ----------------------------------------------------------------------------
def key_feature_max_kernel(x_ref, wk_ref, bk_ref, pk_ref, kmax_ref):
    f32 = jnp.float32
    cdt = wk_ref.dtype                         # compute dtype (f32 or bf16)
    x = x_ref[0]                                                    # (S, H)
    k = jnp.dot(x.astype(cdt), wk_ref[...],
                preferred_element_type=f32) + bk_ref[...]           # (S, H) f32
    # Head-batched feature logits: block-diagonal (H, nh*M) projection with the
    # data_normalizer folded in -> one lane-dense matmul for all heads.
    k_dash = jnp.dot(k.astype(cdt), pk_ref[...],
                     preferred_element_type=f32)                    # (S, nh*M)
    m = jnp.full((1, 1), -jnp.inf, f32)
    m = jnp.maximum(m, jnp.max(k_dash))
    kmax_ref[0] = m


# ----------------------------------------------------------------------------
# Kernel B: fused QKV + Performer feature maps + FAVOR+ + dense + LayerNorm
# ----------------------------------------------------------------------------
def performer_fused_kernel(x_ref, wqkv_ref, bqkv_ref, pq_ref, pk_ref,
                           dblk_ref, eblk_ref, kmax_ref, wd_ref, bd_ref,
                           gamma_ref, beta_ref, out_ref,
                           *, n_heads, nb_features, ln_eps):
    f32 = jnp.float32
    cdt = wqkv_ref.dtype                       # compute dtype (f32 or bf16)
    H = wd_ref.shape[0]
    M = nb_features

    x = x_ref[0]                                                    # (S, H)
    S = x.shape[0]

    def mm(a, b):                              # MXU matmul, f32 accumulation
        return jnp.dot(a.astype(cdt), b.astype(cdt),
                       preferred_element_type=f32)

    # Single lane-dense QKV projection: (S, H) @ (H, 3H).
    qkv = mm(x, wqkv_ref[...]) + bqkv_ref[...]                      # (S, 3H) f32
    q = qkv[:, :H]
    k = qkv[:, H:2 * H]
    v = qkv[:, 2 * H:]

    ratio = float(nb_features) ** (-0.5)
    eps = 1e-4                                 # softmax_kernel eps
    kmax = kmax_ref[0]                         # global key max (SMEM scalar)

    # All heads batched through the block-diagonal host matrices: no per-head
    # slicing/matmuls, every intermediate stays lane-dense.
    q_dash = mm(q, pq_ref[...])                                     # (S, nh*M)
    k_dash = mm(k, pk_ref[...])                                     # (S, nh*M)
    diag_q = mm(q * q, dblk_ref[...])   # 0.5*dn^2*sum(q_h^2), bcast over M lanes
    diag_k = mm(k * k, dblk_ref[...])

    # Per-head row max for the query branch (torch: max over last dim per head).
    qmax_parts = []
    for h in range(n_heads):                                        # static unroll
        m_h = jnp.max(q_dash[:, h * M:(h + 1) * M], axis=-1, keepdims=True)
        qmax_parts.append(jnp.broadcast_to(m_h, (S, M)))
    qmax = jnp.concatenate(qmax_parts, axis=-1)                     # (S, nh*M)

    q_prime = ratio * (jnp.exp(q_dash - diag_q - qmax) + eps)       # (S, nh*M)
    k_prime = ratio * (jnp.exp(k_dash - diag_k - kmax) + eps)       # (S, nh*M)

    # FAVOR+ linear attention, all heads at once.  e_blk (nh*M, H) is the 0/1
    # block-diagonal head-merge matrix: it broadcasts the per-head denominator
    # over the head's d output lanes and zeroes cross-head terms of the full
    # (nh*M, H) context, so q_prime @ context directly yields the merged (S, H)
    # context layer (no per-head stores, no scratch).
    k_cumsum = jnp.sum(k_prime, axis=0, keepdims=True)              # (1, nh*M)
    denom = mm(q_prime * k_cumsum, eblk_ref[...])                   # (S, H)
    context = lax.dot_general(k_prime.astype(cdt), v.astype(cdt),
                              (((0,), (0,)), ((), ())),
                              preferred_element_type=f32)           # (nh*M, H)
    context = context * eblk_ref[...].astype(f32)                   # mask x-head
    ctx = mm(q_prime, context) / denom                              # (S, H)

    # Output dense + residual + LayerNorm (out_dropout: eval-mode identity).
    hid = mm(ctx, wd_ref[...]) + bd_ref[...]
    y = hid + x.astype(f32)
    mean = jnp.mean(y, axis=-1, keepdims=True)
    var = jnp.mean((y - mean) ** 2, axis=-1, keepdims=True)
    out_ref[0] = ((y - mean) * lax.rsqrt(var + ln_eps)
                  * gamma_ref[...] + beta_ref[...]).astype(out_ref.dtype)


# ----------------------------------------------------------------------------
# Wrapper
# ----------------------------------------------------------------------------
def performer_attention_forward(x, attention_mask, params, *, n_heads,
                                nb_features, ln_eps,
                                compute_dtype=jnp.float32):
    del attention_mask  # unused by the module's forward
    B, S, H = x.shape
    d = H // n_heads
    M = nb_features
    f32 = jnp.float32
    cdt = compute_dtype
    dn = float(d) ** (-0.25)                   # data_normalizer

    # ---- host-side weight prep (done once per call; folded by XLA if jitted).
    eye = jnp.eye(n_heads, dtype=f32)
    pq_blk = jnp.kron(eye, dn * params["proj_q"].T.astype(f32))     # (H, nh*M)
    pk_blk = jnp.kron(eye, dn * params["proj_k"].T.astype(f32))     # (H, nh*M)
    d_blk = jnp.kron(eye, jnp.full((d, M), 0.5 * dn * dn, f32))     # (H, nh*M)
    e_blk = jnp.kron(eye, jnp.ones((M, d), f32))                    # (nh*M, H)

    w_qkv = jnp.concatenate([params["wq"], params["wk"], params["wv"]], axis=1)
    b_qkv = jnp.concatenate([params["bq"], params["bk"], params["bv"]])[None, :]

    # Compute-dtype cast (bf16 halves weight/activation DMA + VMEM and uses the
    # fast MXU path; accumulation stays f32 via preferred_element_type).
    x_c = x.astype(cdt)
    w_qkv_c = w_qkv.astype(cdt)
    wk_c = params["wk"].astype(cdt)
    wd_c = params["wd"].astype(cdt)
    pq_c, pk_c = pq_blk.astype(cdt), pk_blk.astype(cdt)
    dblk_c, eblk_c = d_blk.astype(cdt), e_blk.astype(cdt)

    fixed = lambda shp: pl.BlockSpec(shp, lambda b: tuple(0 for _ in shp))
    batch3 = lambda shp: pl.BlockSpec(shp, lambda b: (b, 0, 0))
    cparams = pltpu.CompilerParams(dimension_semantics=("parallel",),
                                   vmem_limit_bytes=64 << 20)

    # --- Kernel A: per-batch key-feature max ---------------------------------
    kmax_per_b = pl.pallas_call(
        key_feature_max_kernel,
        grid=(B,),
        in_specs=[
            batch3((1, S, H)),                 # x
            fixed((H, H)),                     # Wk
            fixed((1, H)),                     # bk
            fixed((H, n_heads * M)),           # block-diag dn * proj_k^T
        ],
        out_specs=batch3((1, 1, 1)),
        out_shape=jax.ShapeDtypeStruct((B, 1, 1), f32),
        compiler_params=cparams,
    )(x_c, wk_c, params["bk"][None, :], pk_c)

    # Global max over the whole (B, nh, S, M) key-feature tensor (exact torch
    # semantics of torch.max(data_dash)); fed to kernel B as an SMEM scalar.
    kmax = jnp.max(kmax_per_b).reshape(1).astype(f32)

    # --- Kernel B: fused attention + output projection + LayerNorm -----------
    out = pl.pallas_call(
        functools.partial(performer_fused_kernel, n_heads=n_heads,
                          nb_features=M, ln_eps=ln_eps),
        grid=(B,),
        in_specs=[
            batch3((1, S, H)),                 # x
            fixed((H, 3 * H)),                 # fused Wq|Wk|Wv
            fixed((1, 3 * H)),                 # fused bias
            fixed((H, n_heads * M)),           # block-diag dn * proj_q^T
            fixed((H, n_heads * M)),           # block-diag dn * proj_k^T
            fixed((H, n_heads * M)),           # block diag-term matrix
            fixed((n_heads * M, H)),           # head-merge / mask matrix
            pl.BlockSpec(memory_space=pltpu.MemorySpace.SMEM),  # global key max
            fixed((H, H)),                     # dense W
            fixed((1, H)),                     # dense b
            fixed((1, H)),                     # LN gamma
            fixed((1, H)),                     # LN beta
        ],
        out_specs=batch3((1, S, H)),
        out_shape=jax.ShapeDtypeStruct((B, S, H), f32),
        compiler_params=cparams,
    )(x_c, w_qkv_c, b_qkv, pq_c, pk_c, dblk_c, eblk_c, kmax,
      wd_c, params["bd"][None, :],
      params["gamma"][None, :], params["beta"][None, :])
    return out


# ----------------------------------------------------------------------------
# Parameter init (deterministic, mirrors module __init__ shapes)
# ----------------------------------------------------------------------------
def gaussian_orthogonal_random_matrix(rng, nb_rows, nb_cols, scaling=0,
                                      qr_uniform_q=False):
    nb_full_blocks = nb_rows // nb_cols
    blocks = []
    for _ in range(nb_full_blocks):
        unstructured = rng.standard_normal((nb_cols, nb_cols)).astype(np.float32)
        q, r = np.linalg.qr(unstructured)
        if qr_uniform_q:
            q = q * np.sign(np.diag(r))
        blocks.append(q.T)
    remaining = nb_rows - nb_full_blocks * nb_cols
    if remaining > 0:
        unstructured = rng.standard_normal((nb_cols, nb_cols)).astype(np.float32)
        q, _ = np.linalg.qr(unstructured)
        blocks.append(q.T[:remaining])
    final = np.concatenate(blocks, axis=0)
    if scaling == 0:
        multiplier = np.linalg.norm(
            rng.standard_normal((nb_rows, nb_cols)).astype(np.float32), axis=1)
    elif scaling == 1:
        multiplier = math.sqrt(float(nb_cols)) * np.ones((nb_rows,), np.float32)
    else:
        raise ValueError(f"Invalid scaling {scaling}")
    return jnp.asarray(multiplier[:, None] * final, dtype=jnp.float32)


def make_params(key, hidden_size, n_heads, nb_features):
    H, M = hidden_size, nb_features
    d = hidden_size // n_heads
    ks = jax.random.split(key, 8)
    std = 0.02
    params = {
        "wq": std * jax.random.normal(ks[0], (H, H), jnp.float32),
        "bq": jnp.zeros((H,), jnp.float32),
        "wk": std * jax.random.normal(ks[1], (H, H), jnp.float32),
        "bk": jnp.zeros((H,), jnp.float32),
        "wv": std * jax.random.normal(ks[2], (H, H), jnp.float32),
        "bv": jnp.zeros((H,), jnp.float32),
        "wd": std * jax.random.normal(ks[3], (H, H), jnp.float32),
        "bd": jnp.zeros((H,), jnp.float32),
        "gamma": jnp.ones((H,), jnp.float32),
        "beta": jnp.zeros((H,), jnp.float32),
    }
    params["proj_q"] = gaussian_orthogonal_random_matrix(
        np.random.default_rng(1), M, d, scaling=0, qr_uniform_q=False)
    params["proj_k"] = gaussian_orthogonal_random_matrix(
        np.random.default_rng(2), M, d, scaling=0, qr_uniform_q=False)
    return params


# ----------------------------------------------------------------------------
# Pure-JAX reference (for correctness check)
# ----------------------------------------------------------------------------
def reference_forward(x, params, n_heads, nb_features, ln_eps):
    B, S, H = x.shape
    d = H // n_heads

    def split_heads(t):
        return t.reshape(B, S, n_heads, d).transpose(0, 2, 1, 3)

    q = split_heads(x @ params["wq"] + params["bq"])
    k = split_heads(x @ params["wk"] + params["bk"])
    v = split_heads(x @ params["wv"] + params["bv"])
    dn = d ** (-0.25)
    ratio = nb_features ** (-0.5)
    qd = jnp.einsum("bhsd,md->bhsm", dn * q, params["proj_q"])
    kd = jnp.einsum("bhsd,md->bhsm", dn * k, params["proj_k"])
    diag_q = jnp.sum(q ** 2, -1, keepdims=True) * 0.5 * dn ** 2
    diag_k = jnp.sum(k ** 2, -1, keepdims=True) * 0.5 * dn ** 2
    qp = ratio * (jnp.exp(qd - diag_q - jnp.max(qd, -1, keepdims=True)) + 1e-4)
    kp = ratio * (jnp.exp(kd - diag_k - jnp.max(kd)) + 1e-4)
    k_cumsum = kp.sum(-2)
    d_inv = 1.0 / jnp.einsum("bhsm,bhm->bhs", qp, k_cumsum)
    context = jnp.einsum("bhsm,bhse->bhme", kp, v)
    out = jnp.einsum("bhme,bhsm,bhs->bhse", context, qp, d_inv)
    ctx = out.transpose(0, 2, 1, 3).reshape(B, S, H)
    h = ctx @ params["wd"] + params["bd"]
    y = h + x
    mean = y.mean(-1, keepdims=True)
    var = ((y - mean) ** 2).mean(-1, keepdims=True)
    return (y - mean) / jnp.sqrt(var + ln_eps) * params["gamma"] + params["beta"]


if __name__ == "__main__":
    B, S, H, n_heads = 2, 16, 32, 2
    nb_features_ratio = 1.0
    nb_features = int(nb_features_ratio * S)   # 16
    ln_eps = 1e-12

    key = jax.random.PRNGKey(0)
    k_x, k_p = jax.random.split(key)
    x = jax.random.normal(k_x, (B, S, H), jnp.float32)
    attention_mask = jnp.zeros((B, 1, 1, S), jnp.float32)  # unused by forward
    params = make_params(k_p, H, n_heads, nb_features)

    ref = reference_forward(x, params, n_heads, nb_features, ln_eps)

    # f32 compute path: tight parity with the module.
    out = performer_attention_forward(
        x, attention_mask, params,
        n_heads=n_heads, nb_features=nb_features, ln_eps=ln_eps)
    out = jax.block_until_ready(out)
    np.testing.assert_allclose(np.asarray(out), np.asarray(ref),
                               rtol=5e-4, atol=5e-4)

    # bf16 compute path (production MXU throughput, f32 accumulation): same
    # kernel code, loose tolerance against the f32 reference.
    out_bf16 = performer_attention_forward(
        x, attention_mask, params,
        n_heads=n_heads, nb_features=nb_features, ln_eps=ln_eps,
        compute_dtype=jnp.bfloat16)
    out_bf16 = jax.block_until_ready(out_bf16)
    np.testing.assert_allclose(np.asarray(out_bf16), np.asarray(ref),
                               rtol=5e-2, atol=5e-2)

    print("KERNEL_OK")
</pallas_src>

<mosaic_0001>
module attributes {stable_mosaic.version = 11 : i64} {
  func.func @key_feature_max_kernel(%arg0: i32, %arg1: memref<1x16x32xf32, #tpu.memory_space<vmem>>, %arg2: memref<32x32xf32, #tpu.memory_space<vmem>>, %arg3: memref<1x32xf32, #tpu.memory_space<vmem>>, %arg4: memref<32x32xf32, #tpu.memory_space<vmem>>, %arg5: memref<1x1x1xf32, #tpu.memory_space<vmem>>) attributes {dimension_semantics = [#tpu.dimension_semantics<parallel>], iteration_bounds = array<i64: 2>, scalar_prefetch = 0 : i64, scratch_operands = 0 : i64, tpu.core_type = #tpu.core_type<tc>, window_params = [{transform_indices = @transform_0, window_bounds = array<i64: 1, 16, 32>}, {pipeline_mode = #tpu.pipeline_mode<synchronous>, transform_indices = @transform_1, window_bounds = array<i64: 32, 32>}, {pipeline_mode = #tpu.pipeline_mode<synchronous>, transform_indices = @transform_2, window_bounds = array<i64: 1, 32>}, {pipeline_mode = #tpu.pipeline_mode<synchronous>, transform_indices = @transform_3, window_bounds = array<i64: 32, 32>}, {transform_indices = @transform_4, window_bounds = array<i64: 1, 1, 1>}]} {
    %c0 = arith.constant 0 : index
    %c0_0 = arith.constant 0 : index
    %c0_1 = arith.constant 0 : index
    %0 = vector.load %arg1[%c0, %c0_0, %c0_1] : memref<1x16x32xf32, #tpu.memory_space<vmem>>, vector<1x16x32xf32>
    %1 = vector.shape_cast %0 : vector<1x16x32xf32> to vector<16x32xf32>
    %c0_2 = arith.constant 0 : index
    %c0_3 = arith.constant 0 : index
    %2 = vector.load %arg2[%c0_2, %c0_3] : memref<32x32xf32, #tpu.memory_space<vmem>>, vector<32x32xf32>
    %cst = arith.constant dense<0.000000e+00> : vector<16x32xf32>
    %3 = tpu.matmul %1, %2, %cst {dimension_numbers = #tpu.dot_dimension_numbers<[1], [0], [0], [1], [0, 0, 1, 1], [], []>} : vector<16x32xf32>, vector<32x32xf32>, vector<16x32xf32> -> vector<16x32xf32>
    %c0_4 = arith.constant 0 : index
    %c0_5 = arith.constant 0 : index
    %4 = vector.load %arg3[%c0_4, %c0_5] : memref<1x32xf32, #tpu.memory_space<vmem>>, vector<1x32xf32>
    %5 = vector.broadcast %4 : vector<1x32xf32> to vector<16x32xf32>
    %6 = arith.addf %3, %5 : vector<16x32xf32>
    %c0_6 = arith.constant 0 : index
    %c0_7 = arith.constant 0 : index
    %7 = vector.load %arg4[%c0_6, %c0_7] : memref<32x32xf32, #tpu.memory_space<vmem>>, vector<32x32xf32>
    %cst_8 = arith.constant dense<0.000000e+00> : vector<16x32xf32>
    %8 = tpu.matmul %6, %7, %cst_8 {dimension_numbers = #tpu.dot_dimension_numbers<[1], [0], [0], [1], [0, 0, 1, 1], [], []>} : vector<16x32xf32>, vector<32x32xf32>, vector<16x32xf32> -> vector<16x32xf32>
    %cst_9 = arith.constant 0xFF800000 : f32
    %9 = vector.broadcast %cst_9 : f32 to vector<1x1xf32>
    %10 = vector.shape_cast %8 : vector<16x32xf32> to vector<1x16x32xf32>
    %cst_10 = arith.constant dense<0xFF800000> : vector<1xf32>
    %11 = vector.multi_reduction <maximumf>, %10, %cst_10 [1, 2] : vector<1x16x32xf32> to vector<1xf32>
    %12 = vector.shape_cast %11 : vector<1xf32> to vector<1x1x1xf32>
    %13 = vector.extract %12[0, 0, 0] : f32 from vector<1x1x1xf32>
    %14 = vector.broadcast %13 : f32 to vector<1x1xf32>
    %15 = arith.maximumf %9, %14 : vector<1x1xf32>
    %c0_11 = arith.constant 0 : index
    %c0_12 = arith.constant 0 : index
    %c0_13 = arith.constant 0 : index
    %16 = vector.load %arg5[%c0_11, %c0_12, %c0_13] : memref<1x1x1xf32, #tpu.memory_space<vmem>>, vector<1x1x1xf32>
    %17 = vector.shape_cast %16 : vector<1x1x1xf32> to vector<1x1xf32>
    %18 = vector.shape_cast %15 : vector<1x1xf32> to vector<1x1x1xf32>
    tpu.vector_store %arg5[%c0_11, %c0_12, %c0_13], %18 {strides = array<i32>} : memref<1x1x1xf32, #tpu.memory_space<vmem>>, vector<1x1x1xf32>,
    return
  }
  func.func @transform_0(%arg0: i32) -> (i32, i32, i32) {
    %c0_i32 = arith.constant 0 : i32
    %c0_i32_0 = arith.constant 0 : i32
    %c0_i32_1 = arith.constant 0 : i32
    return %arg0, %c0_i32, %c0_i32_0 : i32, i32, i32
  }
  func.func @transform_1(%arg0: i32) -> (i32, i32) {
    %c0_i32 = arith.constant 0 : i32
    %c0_i32_0 = arith.constant 0 : i32
    %c0_i32_1 = arith.constant 0 : i32
    return %c0_i32, %c0_i32_0 : i32, i32
  }
  func.func @transform_2(%arg0: i32) -> (i32, i32) {
    %c0_i32 = arith.constant 0 : i32
    %c0_i32_0 = arith.constant 0 : i32
    %c0_i32_1 = arith.constant 0 : i32
    return %c0_i32, %c0_i32_0 : i32, i32
  }
  func.func @transform_3(%arg0: i32) -> (i32, i32) {
    %c0_i32 = arith.constant 0 : i32
    %c0_i32_0 = arith.constant 0 : i32
    %c0_i32_1 = arith.constant 0 : i32
    return %c0_i32, %c0_i32_0 : i32, i32
  }
  func.func @transform_4(%arg0: i32) -> (i32, i32, i32) {
    %c0_i32 = arith.constant 0 : i32
    %c0_i32_0 = arith.constant 0 : i32
    %c0_i32_1 = arith.constant 0 : i32
    return %arg0, %c0_i32, %c0_i32_0 : i32, i32, i32
  }
}

</mosaic_0001>

<llo_original>
// kernel: tpu_custom_call.1
$region0: #{tpu_custom_call.1}
  #allocation0 [shape = 'u32[]', space=smem, size = 0x4, offset = 0x4, fixed_abs, tag = 'smem constant byte address 0x4 - core index']
  #allocation1 [shape = 'u32[144,128]{1,0:T(1,128)}', space=vmem, size = 0x12000, scoped, tag = 'internal scratch']
  %s0 = inlined_call_operand.hbm [shape: f32[2,16,32], index: 0, kind: input, shape index: {}]
  %s1 = inlined_call_operand.hbm [shape: f32[32,32], index: 1, kind: input, shape index: {}]
  %s2 = inlined_call_operand.hbm [shape: f32[1,32], index: 2, kind: input, shape index: {}]
  %s3 = inlined_call_operand.hbm [shape: f32[32,32], index: 3, kind: input, shape index: {}]
  %s4 = inlined_call_operand.hbm [shape: f32[2,1,1], index: 4, kind: output, shape index: {}]
  %s5 = sld [smem:[#allocation0]]
  $region65: #{tpu_custom_call.1} parent=0
    _
  %s7 = ssub.s32 1, %s5
  %s8 = scalar_select 0, %s7, %s5
  $region1: #{tpu_custom_call.1} parent=0
    #allocation2 [shape = 'u8[16384]{0}', space=vmem, size = 0x4000, scoped, tag = 'input window, operand 0']
    #allocation3 [shape = 's32[2]{0}', space=sflag, size = 0x8, scoped, tag = 'scoped memory for tpu_custom_call.1']
    #allocation4 [shape = 's32[2]{0}', space=sflag, size = 0x8, scoped, tag = 'scoped memory for tpu_custom_call.1']
    #allocation5 [shape = 'u8[16384]{0}', space=vmem, size = 0x4000, scoped, tag = 'input window, operand 1, single buffered']
    #allocation6 [shape = 's32[1]{0}', space=sflag, size = 0x4, scoped, tag = 'scoped memory for tpu_custom_call.1']
    #allocation7 [shape = 'u8[512]{0}', space=vmem, size = 0x400, scoped, tag = 'input window, operand 2, single buffered']
    #allocation8 [shape = 'u8[16384]{0}', space=vmem, size = 0x4000, scoped, tag = 'input window, operand 3, single buffered']
    #allocation9 [shape = 's32[1]{0}', space=sflag, size = 0x4, scoped, tag = 'scoped memory for tpu_custom_call.1']
    #allocation10 [shape = 'u8[1024]{0}', space=vmem, size = 0x400, scoped, tag = 'output window, operand 0']
    %9 = vsyncpa [#allocation3], 0
    %s10 = scalar_lea.sflag [#allocation3], 1
    %11 = vsyncpa %s10, 0
    %12 = vsyncpa [#allocation6], 0
    %13 = vsyncpa [#allocation9], 0
    %14 = vsyncpa [#allocation4], 0
    %s15 = scalar_lea.sflag [#allocation4], 1
    %16 = vsyncpa %s15, 0
    loop: start=0, step=1, limit=4
    $region2: #{tpu_custom_call.1} parent=1 // loop_pre_header
      _
    $region3: #{tpu_custom_call.1} parent=1 // loop_header
      %s18 = sphi 0, %s22
      %p19 = scmp.ge.s32.totalorder %s18, 4
      %s28 = sphi 0, %s30
      %s31 = sphi 0, %s28
      %s32 = sphi 0, %s31
      %s48 = sphi 0, %s32
      %s52 = sphi 0, %s52
      %s54 = sphi 0, %s52
      %s55 = sphi 0, %s54
      %s69 = sphi 0, %s55
      %s73 = sphi 0, %s73
      %s75 = sphi 0, %s73
      %s76 = sphi 0, %s75
      %s90 = sphi 0, %s76
      %s94 = sphi 0, %s94
      %s96 = sphi 0, %s94
      %s97 = sphi 0, %s96
      %s111 = sphi 0, %s97
      %s117 = sphi 0, %s119
      %s120 = sphi 0, %s117
      %s121 = sphi 0, %s120
      %s137 = sphi 0, %s121
    $region4: #{tpu_custom_call.1} parent=1 // loop_header_branch
      %21 = sbr.rel (%p19) target = $region8
    $region5: #{tpu_custom_call.1} parent=1 // loop_body
      %s23 = ssub.s32 %s18, 1
      %s24 = ssub.s32 %s18, 2
      %s25 = sadd.s32 %s18, 1
      %s26 = ssub.s32 %s18, %s25
      %p27 = scmp.eq.s32.totalorder %s26, 0
      %s29 = sadd.s32 %s28, 1
      %s30 = scalar_select %p27, %s28, %s29
      %p33 = pneg %p27
      %p34 = scmp.eq.s32.totalorder %s18, 1
      %p35 = por %p33, %p34
      %p36 = scmp.ne.s32.totalorder %s28, %s31
      %p37 = scmp.eq.s32.totalorder %s18, 0
      %p38 = por %p36, %p37
      %p39 = scmp.ne.s32.totalorder %s28, %s31
      %p40 = scmp.eq.s32.totalorder %s23, 1
      %p41 = por %p39, %p40
      %p42 = scmp.ne.s32.totalorder %s31, %s32
      %p43 = scmp.eq.s32.totalorder %s23, 0
      %p44 = por %p42, %p43
      %p45 = scmp.ne.s32.totalorder %s31, %s32
      %p46 = scmp.eq.s32.totalorder %s24, 1
      %p47 = por %p45, %p46
      %p49 = scmp.ne.s32.totalorder %s32, %s48
      %p50 = scmp.eq.s32.totalorder %s24, 0
      %p51 = por %p49, %p50
      %s53 = sadd.s32 %s52, 1
      %p56 = scmp.eq.s32.totalorder %s18, 1
      %p57 = scmp.ne.s32.totalorder %s52, %s54
      %p58 = scmp.eq.s32.totalorder %s18, 0
      %p59 = por %p57, %p58
      %p60 = scmp.ne.s32.totalorder %s52, %s54
      %p61 = scmp.eq.s32.totalorder %s23, 1
      %p62 = por %p60, %p61
      %p63 = scmp.ne.s32.totalorder %s54, %s55
      %p64 = scmp.eq.s32.totalorder %s23, 0
      %p65 = por %p63, %p64
      %p66 = scmp.ne.s32.totalorder %s54, %s55
      %p67 = scmp.eq.s32.totalorder %s24, 1
      %p68 = por %p66, %p67
      %p70 = scmp.ne.s32.totalorder %s55, %s69
      %p71 = scmp.eq.s32.totalorder %s24, 0
      %p72 = por %p70, %p71
      %s74 = sadd.s32 %s73, 1
      %p77 = scmp.eq.s32.totalorder %s18, 1
      %p78 = scmp.ne.s32.totalorder %s73, %s75
      %p79 = scmp.eq.s32.totalorder %s18, 0
      %p80 = por %p78, %p79
      %p81 = scmp.ne.s32.totalorder %s73, %s75
      %p82 = scmp.eq.s32.totalorder %s23, 1
      %p83 = por %p81, %p82
      %p84 = scmp.ne.s32.totalorder %s75, %s76
      %p85 = scmp.eq.s32.totalorder %s23, 0
      %p86 = por %p84, %p85
      %p87 = scmp.ne.s32.totalorder %s75, %s76
      %p88 = scmp.eq.s32.totalorder %s24, 1
      %p89 = por %p87, %p88
      %p91 = scmp.ne.s32.totalorder %s76, %s90
      %p92 = scmp.eq.s32.totalorder %s24, 0
      %p93 = por %p91, %p92
      %s95 = sadd.s32 %s94, 1
      %p98 = scmp.eq.s32.totalorder %s18, 1
      %p99 = scmp.ne.s32.totalorder %s94, %s96
      %p100 = scmp.eq.s32.totalorder %s18, 0
      %p101 = por %p99, %p100
      %p102 = scmp.ne.s32.totalorder %s94, %s96
      %p103 = scmp.eq.s32.totalorder %s23, 1
      %p104 = por %p102, %p103
      %p105 = scmp.ne.s32.totalorder %s96, %s97
      %p106 = scmp.eq.s32.totalorder %s23, 0
      %p107 = por %p105, %p106
      %p108 = scmp.ne.s32.totalorder %s96, %s97
      %p109 = scmp.eq.s32.totalorder %s24, 1
      %p110 = por %p108, %p109
      %p112 = scmp.ne.s32.totalorder %s97, %s111
      %p113 = scmp.eq.s32.totalorder %s24, 0
      %p114 = por %p112, %p113
      %s115 = ssub.s32 %s18, %s25
      %p116 = scmp.eq.s32.totalorder %s115, 0
      %s118 = sadd.s32 %s117, 1
      %s119 = scalar_select %p116, %s117, %s118
      %p122 = pneg %p116
      %p123 = scmp.eq.s32.totalorder %s18, 1
      %p124 = por %p122, %p123
      %p125 = scmp.ne.s32.totalorder %s117, %s120
      %p126 = scmp.eq.s32.totalorder %s18, 0
      %p127 = por %p125, %p126
      %p128 = scmp.ne.s32.totalorder %s117, %s120
      %p129 = scmp.eq.s32.totalorder %s23, 1
      %p130 = por %p128, %p129
      %p131 = scmp.ne.s32.totalorder %s120, %s121
      %p132 = scmp.eq.s32.totalorder %s23, 0
      %p133 = por %p131, %p132
      %p134 = scmp.ne.s32.totalorder %s120, %s121
      %p135 = scmp.eq.s32.totalorder %s24, 1
      %p136 = por %p134, %p135
      %p138 = scmp.ne.s32.totalorder %s121, %s137
      %p139 = scmp.eq.s32.totalorder %s24, 0
      %p140 = por %p138, %p139
      %p141 = scmp.le.s32.totalorder 1, %s18
      %p142 = scmp.lt.s32.totalorder %s18, 3
      %p143 = pnand %p141, %p142
      %p144 = pneg %p143
      // Predicated region
      $region9: #{tpu_custom_call.1} parent=5 // pred_check
        _
      $region10: #{tpu_custom_call.1} parent=5 // pred_check_branch
        %146 = sbr.rel (%p143) target = $region12
      $region11: #{tpu_custom_call.1} parent=5 // pred_region
        %s147 = ssub.s32 %s18, 1
        // Predicated region
        $region13: #{tpu_custom_call.1} parent=11 // pred_check
          %p148 = pneg %p65
        $region14: #{tpu_custom_call.1} parent=11 // pred_check_branch
          %150 = sbr.rel (%p148) target = $region16
        $region15: #{tpu_custom_call.1} parent=11 // pred_region
          %s152 = ssub.s32 512, 512
          %153 = vsyncadd [#allocation6], %s152
          %s154 = sshll.u32 [#allocation5], 4
          %s155 = int_to_ptr.vmem [resolvable:$true] %s154
          %160 = dma.hbm_to_vmem [thread:$0]  %s1, 512, %s155, [#allocation6], 128, 128, 8
        $region16: #{tpu_custom_call.1} parent=11 // pred_fallthru
          _
        // Predicated region
        $region17: #{tpu_custom_call.1} parent=11 // pred_check
          %p161 = pneg %p86
        $region18: #{tpu_custom_call.1} parent=11 // pred_check_branch
          %163 = sbr.rel (%p161) target = $region20
        $region19: #{tpu_custom_call.1} parent=11 // pred_region
          %s165 = ssub.s32 16, 16
          %166 = vsyncadd [#allocation6], %s165
          %s168 = sshll.u32 [#allocation7], 4
          %s169 = int_to_ptr.vmem [resolvable:$true] %s168
          %171 = dma.hbm_to_vmem [thread:$0]  %s2, 16, %s169, [#allocation6]
        $region20: #{tpu_custom_call.1} parent=11 // pred_fallthru
          _
        // Predicated region
        $region21: #{tpu_custom_call.1} parent=11 // pred_check
          %p172 = pneg %p107
        $region22: #{tpu_custom_call.1} parent=11 // pred_check_branch
          %174 = sbr.rel (%p172) target = $region24
        $region23: #{tpu_custom_call.1} parent=11 // pred_region
          %s176 = ssub.s32 512, 512
          %177 = vsyncadd [#allocation9], %s176
          %s178 = sshll.u32 [#allocation8], 4
          %s179 = int_to_ptr.vmem [resolvable:$true] %s178
          %184 = dma.hbm_to_vmem [thread:$0]  %s3, 512, %s179, [#allocation9], 128, 128, 8
        $region24: #{tpu_custom_call.1} parent=11 // pred_fallthru
          _
      $region12: #{tpu_custom_call.1} parent=5 // pred_fallthru
        _
      %p185 = scmp.lt.s32.totalorder %s18, 2
      // Predicated region
      $region25: #{tpu_custom_call.1} parent=5 // pred_check
        %p186 = pneg %p185
      $region26: #{tpu_custom_call.1} parent=5 // pred_check_branch
        %188 = sbr.rel (%p186) target = $region28
      $region27: #{tpu_custom_call.1} parent=5 // pred_region
        // Predicated region
        $region29: #{tpu_custom_call.1} parent=27 // pred_check
          %p189 = pneg %p38
        $region30: #{tpu_custom_call.1} parent=27 // pred_check_branch
          %191 = sbr.rel (%p189) target = $region32
        $region31: #{tpu_custom_call.1} parent=27 // pred_region
          %s192 = sand.u32 %s28, 1
          %s193 = scalar_lea.sflag [#allocation3], %s192
          %s194 = sand.u32 %s28, 1
          %s195 = smul.addr %s194, 16
          %s196 = scalar_lea.vmem [#allocation2], %s195
          %s198 = ssub.s32 256, 256
          %199 = vsyncadd %s193, %s198
          %s200 = smul.addr %s18, 2
          %s201 = smul.addr %s200, 128
          %s202 = scalar_lea.hbm %s0, %s201
          %s203 = sshll.u32 %s196, 4
          %s204 = int_to_ptr.vmem [resolvable:$true] %s203
          %209 = dma.hbm_to_vmem [thread:$0]  %s202, 256, %s204, %s193, 128, 128, 8
        $region32: #{tpu_custom_call.1} parent=27 // pred_fallthru
          _
      $region28: #{tpu_custom_call.1} parent=5 // pred_fallthru
        _
      %p210 = scmp.le.s32.totalorder 1, %s18
      %p211 = scmp.lt.s32.totalorder %s18, 3
      %p212 = pnand %p210, %p211
      %p213 = pneg %p212
      // Predicated region
      $region33: #{tpu_custom_call.1} parent=5 // pred_check
        _
      $region34: #{tpu_custom_call.1} parent=5 // pred_check_branch
        %215 = sbr.rel (%p212) target = $region36
      $region35: #{tpu_custom_call.1} parent=5 // pred_region
        %s216 = ssub.s32 %s18, 1
        %s217 = sand.u32 %s31, 1
        %s218 = scalar_lea.sflag [#allocation3], %s217
        %s219 = sand.u32 %s31, 1
        %s220 = smul.addr %s219, 16
        %s221 = scalar_lea.vmem [#allocation2], %s220
        // Predicated region
        $region37: #{tpu_custom_call.1} parent=35 // pred_check
          %p222 = pneg %p44
        $region38: #{tpu_custom_call.1} parent=35 // pred_check_branch
          %224 = sbr.rel (%p222) target = $region40
        $region39: #{tpu_custom_call.1} parent=35 // pred_region
          %225 = dma.done %s218, 256
        $region40: #{tpu_custom_call.1} parent=35 // pred_fallthru
          _
        // Predicated region
        $region41: #{tpu_custom_call.1} parent=35 // pred_check
          %p226 = pneg %p65
        $region42: #{tpu_custom_call.1} parent=35 // pred_check_branch
          %228 = sbr.rel (%p226) target = $region44
        $region43: #{tpu_custom_call.1} parent=35 // pred_region
          %229 = dma.done [#allocation6], 512
        $region44: #{tpu_custom_call.1} parent=35 // pred_fallthru
          _
        // Predicated region
        $region45: #{tpu_custom_call.1} parent=35 // pred_check
          %p230 = pneg %p86
        $region46: #{tpu_custom_call.1} parent=35 // pred_check_branch
          %232 = sbr.rel (%p230) target = $region48
        $region47: #{tpu_custom_call.1} parent=35 // pred_region
          %233 = dma.done [#allocation6], 16
        $region48: #{tpu_custom_call.1} parent=35 // pred_fallthru
          _
        // Predicated region
        $region49: #{tpu_custom_call.1} parent=35 // pred_check
          %p234 = pneg %p107
        $region50: #{tpu_custom_call.1} parent=35 // pred_check_branch
          %236 = sbr.rel (%p234) target = $region52
        $region51: #{tpu_custom_call.1} parent=35 // pred_region
          %237 = dma.done [#allocation9], 512
        $region52: #{tpu_custom_call.1} parent=35 // pred_fallthru
          _
        %s238 = sand.u32 %s31, 1
        %s239 = scalar_lea.sflag [#allocation3], %s238
        %s240 = sand.u32 %s31, 1
        %s241 = smul.addr %s240, 16
        %s242 = scalar_lea.vmem [#allocation2], %s241
        %p243 = pneg %p44
        %p244 = pneg %p41
        %p245 = pneg %p65
        %p246 = pneg %p62
        %p247 = pneg %p86
        %p248 = pneg %p83
        %p249 = pneg %p107
        %p250 = pneg %p104
        %p251 = pneg %p133
        %p252 = pneg %p130
        %s253 = sand.u32 %s120, 1
        %s254 = scalar_lea.sflag [#allocation4], %s253
        %s255 = sand.u32 %s120, 1
        %s256 = scalar_lea.vmem [#allocation10], %s255
        %v257 = vld [vmem:[%s221] sm:$0xff]
        %v258 = vld [vmem:[%s221 + $0x8] sm:$0xff]
        %v259 = vld [vmem:[#allocation5] sm:$0xff]
        %v260 = vld [vmem:[#allocation5 + $0x8] sm:$0xff]
        %v261 = vld [vmem:[#allocation5 + $0x10] sm:$0xff]
        %v262 = vld [vmem:[#allocation5 + $0x18] sm:$0xff]
        %v263 = vld [vmem:[#allocation7] sm:$0x1]
        %v265 = vlaneseq
        %v266 = vshrl.u32 %v265, 7
        %v267 = vsub.s32 0, %v266
        %v268 = vrot.slane %v263, %v267
        %vm270 = vcmask 261120
        %v272 = vsel %vm270, %v257, 0
        %v275 = vsel %vm270, %v258, 0
        %277 = vmatprep.subr.mxu0 0.0
        %278 = vmatpush1.msra.mxu0 %v259
        %279 = vmatprep.subr.mxu0 0.0
        %280 = vmatpush1.msra.mxu0 %v260
        %281 = vmatprep.subr.mxu0 0.0
        %282 = vmatpush1.msra.mxu0 %v261
        %283 = vmatprep.subr.mxu0 0.0
        %284 = vmatpush1.msra.mxu0 %v262
        %285 = vmatprep.subr.mxu0 0.0
        %286 = vmatpush1.msra.mxu0 0.0
        %287 = vmatprep.subr.mxu0 0.0
        %288 = vmatpush1.msra.mxu0 0.0
        %289 = vmatprep.subr.mxu0 0.0
        %290 = vmatpush1.msra.mxu0 0.0
        %291 = vmatprep.subr.mxu0 0.0
        %292 = vmatpush1.msra.mxu0 0.0
        %293 = vmatprep.subr.mxu0 0.0
        %294 = vmatpush1.msra.mxu0 0.0
        %295 = vmatprep.subr.mxu0 0.0
        %296 = vmatpush1.msra.mxu0 0.0
        %297 = vmatprep.subr.mxu0 0.0
        %298 = vmatpush1.msra.mxu0 0.0
        %299 = vmatprep.subr.mxu0 0.0
        %300 = vmatpush1.msra.mxu0 0.0
        %301 = vmatprep.subr.mxu0 0.0
        %302 = vmatpush1.msra.mxu0 0.0
        %303 = vmatprep.subr.mxu0 0.0
        %304 = vmatpush1.msra.mxu0 0.0
        %305 = vmatprep.subr.mxu0 0.0
        %306 = vmatpush1.msra.mxu0 0.0
        %307 = vmatprep.subr.mxu0 0.0
        %308 = vmatpush1.msra.mxu0 0.0
        %309 = vmatprep.subr.mxu0 0.0
        %310 = vmatpush1.msra.mxu0 0.0
        %311 = vmatprep.subr.mxu0 0.0
        %312 = vmatpush1.msra.mxu0 0.0
        %313 = vmatprep.subr.mxu0 0.0
        %314 = vmatpush1.msra.mxu0 0.0
        %315 = vmatprep.subr.mxu0 0.0
        %316 = vmatpush1.msra.mxu0 0.0
        %317 = vmatprep.subr.mxu0 0.0
        %318 = vmatpush1.msra.mxu0 0.0
        %319 = vmatprep.subr.mxu0 0.0
        %320 = vmatpush1.msra.mxu0 0.0
        %321 = vmatprep.subr.mxu0 0.0
        %322 = vmatpush1.msra.mxu0 0.0
        %323 = vmatprep.subr.mxu0 0.0
        %324 = vmatpush1.msra.mxu0 0.0
        %325 = vmatprep.subr.mxu0 0.0
        %326 = vmatpush1.msra.mxu0 0.0
        %327 = vmatprep.subr.mxu0 0.0
        %328 = vmatpush1.msra.mxu0 0.0
        %329 = vmatprep.subr.mxu0 0.0
        %330 = vmatpush1.msra.mxu0 0.0
        %331 = vmatprep.subr.mxu0 0.0
        %332 = vmatpush1.msra.mxu0 0.0
        %333 = vmatprep.subr.mxu0 0.0
        %334 = vmatpush1.msra.mxu0 0.0
        %335 = vmatprep.subr.mxu0 0.0
        %336 = vmatpush1.msra.mxu0 0.0
        %337 = vmatprep.subr.mxu0 0.0
        %338 = vmatpush1.msra.mxu0 0.0
        %339 = vmatprep.subr.mxu0 0.0
        %340 = vmatpush1.msra.mxu0 0.0
        %341 = vmatprep.mubr.f32.mxu0 0.0
        %342 = vmatmul.mubr.f32.gmra.mrb[0].mxu0 %v272
        %v343 = vpop.f32.mrb[0].mxu0
        %v344 = vadd.f32 %v268, %v343
        %v345 = vpop.f32.mrb[0].mxu0
        %346 = vmatprep.mubr.f32.mxu0 0.0
        %347 = vmatmul.mubr.f32.gmra.mrb[0].mxu0 %v275
        %v348 = vpop.f32.mrb[0].mxu0
        %v349 = vadd.f32 %v268, %v348
        %v350 = vpop.f32.mrb[0].mxu0
        %351 = vdwg.mxu0
        %v352 = vld [vmem:[#allocation8] sm:$0xff]
        %v353 = vld [vmem:[#allocation8 + $0x8] sm:$0xff]
        %v354 = vld [vmem:[#allocation8 + $0x10] sm:$0xff]
        %v355 = vld [vmem:[#allocation8 + $0x18] sm:$0xff]
        %v357 = vsel %vm270, %v344, 0
        %v360 = vsel %vm270, %v349, 0
        %362 = vmatprep.subr.mxu0 0.0
        %363 = vmatpush1.msra.mxu0 %v352
        %364 = vmatprep.subr.mxu0 0.0
        %365 = vmatpush1.msra.mxu0 %v353
        %366 = vmatprep.subr.mxu0 0.0
        %367 = vmatpush1.msra.mxu0 %v354
        %368 = vmatprep.subr.mxu0 0.0
        %369 = vmatpush1.msra.mxu0 %v355
        %370 = vmatprep.subr.mxu0 0.0
        %371 = vmatpush1.msra.mxu0 0.0
        %372 = vmatprep.subr.mxu0 0.0
        %373 = vmatpush1.msra.mxu0 0.0
        %374 = vmatprep.subr.mxu0 0.0
        %375 = vmatpush1.msra.mxu0 0.0
        %376 = vmatprep.subr.mxu0 0.0
        %377 = vmatpush1.msra.mxu0 0.0
        %378 = vmatprep.subr.mxu0 0.0
        %379 = vmatpush1.msra.mxu0 0.0
        %380 = vmatprep.subr.mxu0 0.0
        %381 = vmatpush1.msra.mxu0 0.0
        %382 = vmatprep.subr.mxu0 0.0
        %383 = vmatpush1.msra.mxu0 0.0
        %384 = vmatprep.subr.mxu0 0.0
        %385 = vmatpush1.msra.mxu0 0.0
        %386 = vmatprep.subr.mxu0 0.0
        %387 = vmatpush1.msra.mxu0 0.0
        %388 = vmatprep.subr.mxu0 0.0
        %389 = vmatpush1.msra.mxu0 0.0
        %390 = vmatprep.subr.mxu0 0.0
        %391 = vmatpush1.msra.mxu0 0.0
        %392 = vmatprep.subr.mxu0 0.0
        %393 = vmatpush1.msra.mxu0 0.0
        %394 = vmatprep.subr.mxu0 0.0
        %395 = vmatpush1.msra.mxu0 0.0
        %396 = vmatprep.subr.mxu0 0.0
        %397 = vmatpush1.msra.mxu0 0.0
        %398 = vmatprep.subr.mxu0 0.0
        %399 = vmatpush1.msra.mxu0 0.0
        %400 = vmatprep.subr.mxu0 0.0
        %401 = vmatpush1.msra.mxu0 0.0
        %402 = vmatprep.subr.mxu0 0.0
        %403 = vmatpush1.msra.mxu0 0.0
        %404 = vmatprep.subr.mxu0 0.0
        %405 = vmatpush1.msra.mxu0 0.0
        %406 = vmatprep.subr.mxu0 0.0
        %407 = vmatpush1.msra.mxu0 0.0
        %408 = vmatprep.subr.mxu0 0.0
        %409 = vmatpush1.msra.mxu0 0.0
        %410 = vmatprep.subr.mxu0 0.0
        %411 = vmatpush1.msra.mxu0 0.0
        %412 = vmatprep.subr.mxu0 0.0
        %413 = vmatpush1.msra.mxu0 0.0
        %414 = vmatprep.subr.mxu0 0.0
        %415 = vmatpush1.msra.mxu0 0.0
        %416 = vmatprep.subr.mxu0 0.0
        %417 = vmatpush1.msra.mxu0 0.0
        %418 = vmatprep.subr.mxu0 0.0
        %419 = vmatpush1.msra.mxu0 0.0
        %420 = vmatprep.subr.mxu0 0.0
        %421 = vmatpush1.msra.mxu0 0.0
        %422 = vmatprep.subr.mxu0 0.0
        %423 = vmatpush1.msra.mxu0 0.0
        %424 = vmatprep.subr.mxu0 0.0
        %425 = vmatpush1.msra.mxu0 0.0
        %426 = vmatprep.mubr.f32.mxu0 0.0
        %427 = vmatmul.mubr.f32.gmra.mrb[0].mxu0 %v357
        %v428 = vpop.f32.mrb[0].mxu0
        %v429 = vadd.f32 0.0, %v428
        %v430 = vpop.f32.mrb[0].mxu0
        %431 = vmatprep.mubr.f32.mxu0 0.0
        %432 = vmatmul.mubr.f32.gmra.mrb[0].mxu0 %v360
        %v433 = vpop.f32.mrb[0].mxu0
        %v434 = vadd.f32 0.0, %v433
        %v435 = vpop.f32.mrb[0].mxu0
        %436 = vdwg.mxu0
        %v437 = vsel %vm270, %v429, -inf
        %v438 = vsel %vm270, %v434, -inf
        %v439 = vmax.f32 %v437, %v438
        %440 = vmax.xlane.f32.xlu0 %v439
        %v441 = vpop.xlane.xlu0 %440
        %v442 = vrot.slane %v441, 4
        %v443 = vmax.f32 %v441, %v442
        %v444 = vrot.slane %v443, 2
        %v445 = vmax.f32 %v443, %v444
        %v446 = vrot.slane %v445, 1
        %v447 = vmax.f32 %v445, %v446
        %s448 = vtos %v447
        %v449 = vstv %s448
        %vm450 = vcmask 0
        %451 = vst.msk [vmem:[%s256] sm:$0x1] %vm450, %v449
        %s452 = sand.u32 %s120, 1
        %s453 = scalar_lea.sflag [#allocation4], %s452
        %s454 = sand.u32 %s120, 1
        %s455 = scalar_lea.vmem [#allocation10], %s454
        // Predicated region
        $region53: #{tpu_custom_call.1} parent=35 // pred_check
          %p456 = pneg %p130
        $region54: #{tpu_custom_call.1} parent=35 // pred_check_branch
          %458 = sbr.rel (%p456) target = $region56
        $region55: #{tpu_custom_call.1} parent=35 // pred_region
          %s460 = ssub.s32 16, 16
          %461 = vsyncadd %s453, %s460
          %s462 = smul.addr %s23, 16
          %s463 = scalar_lea.hbm %s4, %s462
          %s465 = sshll.u32 %s455, 4
          %s466 = int_to_ptr.vmem [resolvable:$true] %s465
          %468 = dma.vmem_to_hbm [thread:$0]  %s466, 16, %s463, %s453
        $region56: #{tpu_custom_call.1} parent=35 // pred_fallthru
          _
      $region36: #{tpu_custom_call.1} parent=5 // pred_fallthru
        _
      %p469 = scmp.le.s32.totalorder 2, %s18
      // Predicated region
      $region57: #{tpu_custom_call.1} parent=5 // pred_check
        %p470 = pneg %p469
      $region58: #{tpu_custom_call.1} parent=5 // pred_check_branch
        %472 = sbr.rel (%p470) target = $region60
      $region59: #{tpu_custom_call.1} parent=5 // pred_region
        %s473 = ssub.s32 %s18, 2
        // Predicated region
        $region61: #{tpu_custom_call.1} parent=59 // pred_check
          %p474 = pneg %p136
        $region62: #{tpu_custom_call.1} parent=59 // pred_check_branch
          %476 = sbr.rel (%p474) target = $region64
        $region63: #{tpu_custom_call.1} parent=59 // pred_region
          %s477 = sand.u32 %s121, 1
          %s478 = scalar_lea.sflag [#allocation4], %s477
          %s479 = sand.u32 %s121, 1
          %s480 = scalar_lea.vmem [#allocation10], %s479
          %481 = dma.done %s478, 16
        $region64: #{tpu_custom_call.1} parent=59 // pred_fallthru
          _
      $region60: #{tpu_custom_call.1} parent=5 // pred_fallthru
        _
    $region6: #{tpu_custom_call.1} parent=1 // loop_footer
      %s22 = sadd.s32 1, %s18
    $region7: #{tpu_custom_call.1} parent=1 // loop_footer_branch
      %17 = sbr.rel target = $region3
    $region8: #{tpu_custom_call.1} parent=1 // loop_exit
      _
    %482 = vsyncpa [#allocation3], 1
    %s483 = scalar_lea.sflag [#allocation3], 1
    %484 = vsyncpa %s483, 1
    %485 = vsyncpa [#allocation6], 1
    %486 = vsyncpa [#allocation9], 1
    %487 = vsyncpa [#allocation4], 1
    %s488 = scalar_lea.sflag [#allocation4], 1
    %489 = vsyncpa %s488, 1

</llo_original>
